<compile_context>
chip_gen: v5e
topology: v5e:2x2
jax: 0.10.0
libtpu: 0.0.40
codegen_flags: <defaults>
</compile_context>

<pallas_src>
import functools
import math

import jax
import jax.numpy as jnp
from jax.experimental import pallas as pl
from jax.experimental.pallas import tpu as pltpu

# Finite stand-in for -inf: avoids any inf-inf/NaN paths while exp() still
# underflows to exactly 0 for masked entries.
NEG_INF = -1e30


def _flash_attention_kernel(q_ref, k_ref, v_ref, o_ref,
                            m_scr, l_scr, acc_scr,
                            *, scale, causal, block_q, block_k):
    # q_ref: (1, Tq, E)   k_ref: (1, Tk, E)   v_ref: (1, Tk, D)
    # o_ref: (1, Tq, D)
    # m_scr/l_scr: (Tq, 1) f32   acc_scr: (Tq, D) f32
    q_i = pl.program_id(1)
    kv_i = pl.program_id(2)

    @pl.when(kv_i == 0)
    def _init():
        m_scr[...] = jnp.full(m_scr.shape, NEG_INF, dtype=m_scr.dtype)
        l_scr[...] = jnp.zeros(l_scr.shape, l_scr.dtype)
        acc_scr[...] = jnp.zeros(acc_scr.shape, acc_scr.dtype)

    def _compute():
        # Fold the softmax scale into q: VPU work on the cheap (Tq, E) tile
        # instead of the (Tq, Tk) score matrix.
        q = q_ref[0] * jnp.asarray(scale, dtype=q_ref.dtype)   # (Tq, E)
        k = k_ref[0]                                            # (Tk, E)
        v = v_ref[0]                                            # (Tk, D)

        # scores[i, j] = sum_e q[i, e] * k[j, e]; contract E of both operands
        # (no k transpose / relayout), accumulate in f32 on the MXU.
        s = jax.lax.dot_general(
            q, k, (((1,), (1,)), ((), ())),
            preferred_element_type=jnp.float32)                 # (Tq, Tk) f32

        if causal:
            row = q_i * block_q + jax.lax.broadcasted_iota(
                jnp.int32, (block_q, block_k), 0)
            col = kv_i * block_k + jax.lax.broadcasted_iota(
                jnp.int32, (block_q, block_k), 1)
            s = jnp.where(col > row, NEG_INF, s)   # TriangularCausalMask (k=1)

        # Online softmax update.
        m_prev = m_scr[...]                                     # (Tq, 1)
        m_new = jnp.maximum(m_prev, jnp.max(s, axis=-1, keepdims=True))
        alpha = jnp.exp(m_prev - m_new)                         # (Tq, 1)

        # exp in bf16 only when the whole pipeline is bf16 (EUP is the binding
        # unit on v6e/v7x at head_dim ~64; bf16 doubles its throughput).  For
        # f32 inputs keep full-precision exp.
        exp_dtype = jnp.bfloat16 if q_ref.dtype == jnp.bfloat16 else jnp.float32
        p = jnp.exp((s - m_new).astype(exp_dtype))              # (Tq, Tk)

        l_scr[...] = alpha * l_scr[...] + jnp.sum(
            p.astype(jnp.float32), axis=-1, keepdims=True)
        acc_scr[...] = alpha * acc_scr[...] + jax.lax.dot_general(
            p.astype(v.dtype), v, (((1,), (0,)), ((), ())),
            preferred_element_type=jnp.float32)                 # (Tq, D) f32
        m_scr[...] = m_new

    if causal:
        # Skip kv tiles strictly above the causal diagonal: ~half the QK flops
        # and exp() work for L == S.  (Tile 0 is always processed, so every
        # query row sees at least one valid key before finalize.)
        pl.when(kv_i * block_k < (q_i + 1) * block_q)(_compute)
    else:
        _compute()

    @pl.when(kv_i == pl.num_programs(2) - 1)
    def _finalize():
        # Exact normalization (no approximate reciprocal).
        o_ref[0] = (acc_scr[...] / l_scr[...]).astype(o_ref.dtype)


def _pick_tile(n, target=256):
    """Largest tile <= target that divides n and keeps the (8,128) block rule.

    Defaults to 256-multiples (v6e/v7x MXU width); pass target=128 on v5e.
    Falls back to the full dimension (always a legal block shape).
    """
    for t in (target, 256, 128, 64, 32, 16, 8):
        if t <= n and n % t == 0:
            return t
    return n


def full_attention(queries, keys, values, attn_mask=None, mask_flag=True,
                   scale=None, block_q=None, block_k=None):
    """Pallas implementation of FullAttention.forward (eval mode).

    queries: [B, L, H, E], keys: [B, S, H, E], values: [B, S, H, D]
    Returns (V [B, L, H, D], None)  (output_attention=False path).
    """
    if attn_mask is not None:
        # TODO(synk): caller-supplied padding / ProbMask support.
        raise NotImplementedError(
            "full_attention only supports the internally generated causal mask")

    B, L, H, E = queries.shape
    _, S, _, D = values.shape
    scale = scale or 1.0 / math.sqrt(E)

    # Head-major layout so each grid step works on plain 2-D (Tq,E)/(Tk,E)/(Tk,D)
    # tiles — no sublane-strided per-head slicing inside the kernel.
    q = jnp.transpose(queries, (0, 2, 1, 3)).reshape(B * H, L, E)
    k = jnp.transpose(keys, (0, 2, 1, 3)).reshape(B * H, S, E)
    v = jnp.transpose(values, (0, 2, 1, 3)).reshape(B * H, S, D)

    bq = block_q if block_q is not None else _pick_tile(L)
    bk = block_k if block_k is not None else _pick_tile(S)
    assert L % bq == 0 and S % bk == 0, "tile sizes must divide L and S"
    n_q, n_kv = L // bq, S // bk

    kernel = functools.partial(_flash_attention_kernel, scale=scale,
                               causal=mask_flag, block_q=bq, block_k=bk)

    itemsize = jnp.dtype(queries.dtype).itemsize
    flops = 2 * B * H * L * S * (E + D)
    transcendentals = B * H * L * S
    if mask_flag:                      # causal skip removes ~half the work
        flops //= 2
        transcendentals //= 2
    bytes_accessed = itemsize * (B * H * (L * E + S * E + S * D + L * D))

    out = pl.pallas_call(
        kernel,
        out_shape=jax.ShapeDtypeStruct((B * H, L, D), queries.dtype),
        grid_spec=pltpu.PrefetchScalarGridSpec(
            num_scalar_prefetch=0,
            grid=(B * H, n_q, n_kv),
            in_specs=[
                pl.BlockSpec((1, bq, E), lambda bh, qi, ki: (bh, qi, 0)),
                pl.BlockSpec((1, bk, E), lambda bh, qi, ki: (bh, ki, 0)),
                pl.BlockSpec((1, bk, D), lambda bh, qi, ki: (bh, ki, 0)),
            ],
            out_specs=pl.BlockSpec((1, bq, D), lambda bh, qi, ki: (bh, qi, 0)),
            scratch_shapes=[
                pltpu.VMEM((bq, 1), jnp.float32),   # running max
                pltpu.VMEM((bq, 1), jnp.float32),   # running denom
                pltpu.VMEM((bq, D), jnp.float32),   # running numerator
            ],
        ),
        compiler_params=pltpu.CompilerParams(
            dimension_semantics=("parallel", "parallel", "arbitrary")),
        cost_estimate=pl.CostEstimate(
            flops=int(flops), transcendentals=int(transcendentals),
            bytes_accessed=int(bytes_accessed)),
    )(q, k, v)

    V = out.reshape(B, H, L, D).transpose(0, 2, 1, 3)   # [B, L, H, D]
    return V, None


def _reference(queries, keys, values, mask_flag=True, scale=None):
    B, L, H, E = queries.shape
    scale = scale or 1.0 / math.sqrt(E)
    scores = jnp.einsum('blhe,bshe->bhls', queries, keys,
                        precision=jax.lax.Precision.HIGHEST)
    if mask_flag:
        Lq, Sk = scores.shape[-2:]
        mask = jnp.triu(jnp.ones((Lq, Sk), dtype=bool), k=1)
        scores = jnp.where(mask[None, None], -jnp.inf, scores)
    A = jax.nn.softmax(scale * scores, axis=-1)
    V = jnp.einsum('bhls,bshd->blhd', A, values,
                   precision=jax.lax.Precision.HIGHEST)
    return V


def _check(q, k, v, mask_flag, **kw):
    V, attn = full_attention(q, k, v, attn_mask=None, mask_flag=mask_flag, **kw)
    V = jax.block_until_ready(V)
    V_ref = _reference(q, k, v, mask_flag=mask_flag)
    assert V.shape == V_ref.shape
    assert attn is None
    # Tolerance covers MXU f32 pass-decomposition differences between the
    # in-kernel matmuls and the XLA reference einsums across TPU generations;
    # interpret-mode / exact-f32 error is ~1e-6.
    assert jnp.allclose(V, V_ref, atol=2e-2, rtol=2e-2), "mismatch vs reference"


if __name__ == "__main__":
    key = jax.random.PRNGKey(0)
    kq, kk, kv = jax.random.split(key, 3)

    # Small shape matching the Encoder's self-attention: B=2, L=S=8, H=4, E=D=32.
    B, L, S, H, E, D = 2, 8, 8, 4, 32, 32
    q = jax.random.normal(kq, (B, L, H, E), dtype=jnp.float32)
    k = jax.random.normal(kk, (B, S, H, E), dtype=jnp.float32)
    v = jax.random.normal(kv, (B, S, H, D), dtype=jnp.float32)
    _check(q, k, v, mask_flag=True)            # single-tile causal path

    # Multi-tile path: exercises the online softmax, init/finalize gating and
    # the causal kv-tile skip (forced 8x8 tiles -> 4x4 kv/q tile grid).
    B2, L2, H2 = 1, 32, 2
    q2 = jax.random.normal(kq, (B2, L2, H2, E), dtype=jnp.float32)
    k2 = jax.random.normal(kk, (B2, L2, H2, E), dtype=jnp.float32)
    v2 = jax.random.normal(kv, (B2, L2, H2, D), dtype=jnp.float32)
    _check(q2, k2, v2, mask_flag=True, block_q=8, block_k=8)
    _check(q2, k2, v2, mask_flag=False, block_q=8, block_k=8)

    print("KERNEL_OK")
</pallas_src>

<mosaic_0001>
module attributes {stable_mosaic.version = 11 : i64} {
  func.func @_flash_attention_kernel(%arg0: i32, %arg1: i32, %arg2: i32, %arg3: memref<1x8x32xf32, #tpu.memory_space<vmem>>, %arg4: memref<1x8x32xf32, #tpu.memory_space<vmem>>, %arg5: memref<1x8x32xf32, #tpu.memory_space<vmem>>, %arg6: memref<1x8x32xf32, #tpu.memory_space<vmem>>, %arg7: memref<8x1xf32, #tpu.memory_space<vmem>>, %arg8: memref<8x1xf32, #tpu.memory_space<vmem>>, %arg9: memref<8x32xf32, #tpu.memory_space<vmem>>) attributes {dimension_semantics = [#tpu.dimension_semantics<parallel>, #tpu.dimension_semantics<parallel>, #tpu.dimension_semantics<arbitrary>], iteration_bounds = array<i64: 8, 1, 1>, scalar_prefetch = 0 : i64, scratch_operands = 3 : i64, tpu.core_type = #tpu.core_type<tc>, window_params = [{transform_indices = @transform_0, window_bounds = array<i64: 1, 8, 32>}, {transform_indices = @transform_1, window_bounds = array<i64: 1, 8, 32>}, {transform_indices = @transform_2, window_bounds = array<i64: 1, 8, 32>}, {transform_indices = @transform_3, window_bounds = array<i64: 1, 8, 32>}]} {
    %c0_i32 = arith.constant 0 : i32
    %0 = arith.cmpi eq, %arg2, %c0_i32 : i32
    %1 = arith.extui %0 : i1 to i32
    %c0_i32_0 = arith.constant 0 : i32
    %2 = arith.cmpi ne, %1, %c0_i32_0 : i32
    scf.if %2 {
      %cst = arith.constant -1.000000e+30 : f32
      %12 = vector.broadcast %cst : f32 to vector<8x1xf32>
      %c0 = arith.constant 0 : index
      %c0_5 = arith.constant 0 : index
      %13 = vector.load %arg7[%c0, %c0_5] : memref<8x1xf32, #tpu.memory_space<vmem>>, vector<8x1xf32>
      tpu.vector_store %arg7[%c0, %c0_5], %12 {strides = array<i32>} : memref<8x1xf32, #tpu.memory_space<vmem>>, vector<8x1xf32>,
      %cst_6 = arith.constant 0.000000e+00 : f32
      %14 = vector.broadcast %cst_6 : f32 to vector<8x1xf32>
      %c0_7 = arith.constant 0 : index
      %c0_8 = arith.constant 0 : index
      %15 = vector.load %arg8[%c0_7, %c0_8] : memref<8x1xf32, #tpu.memory_space<vmem>>, vector<8x1xf32>
      tpu.vector_store %arg8[%c0_7, %c0_8], %14 {strides = array<i32>} : memref<8x1xf32, #tpu.memory_space<vmem>>, vector<8x1xf32>,
      %cst_9 = arith.constant 0.000000e+00 : f32
      %16 = vector.broadcast %cst_9 : f32 to vector<8x32xf32>
      %c0_10 = arith.constant 0 : index
      %c0_11 = arith.constant 0 : index
      %17 = vector.load %arg9[%c0_10, %c0_11] : memref<8x32xf32, #tpu.memory_space<vmem>>, vector<8x32xf32>
      tpu.vector_store %arg9[%c0_10, %c0_11], %16 {strides = array<i32>} : memref<8x32xf32, #tpu.memory_space<vmem>>, vector<8x32xf32>,
    } else {
    }
    %c8_i32 = arith.constant 8 : i32
    %3 = arith.muli %arg2, %c8_i32 : i32
    %c1_i32 = arith.constant 1 : i32
    %4 = arith.addi %arg1, %c1_i32 : i32
    %c8_i32_1 = arith.constant 8 : i32
    %5 = arith.muli %4, %c8_i32_1 : i32
    %6 = arith.cmpi slt, %3, %5 : i32
    %7 = arith.extui %6 : i1 to i32
    %c0_i32_2 = arith.constant 0 : i32
    %8 = arith.cmpi ne, %7, %c0_i32_2 : i32
    scf.if %8 {
      %c0 = arith.constant 0 : index
      %c0_5 = arith.constant 0 : index
      %c0_6 = arith.constant 0 : index
      %12 = vector.load %arg3[%c0, %c0_5, %c0_6] : memref<1x8x32xf32, #tpu.memory_space<vmem>>, vector<1x8x32xf32>
      %13 = vector.shape_cast %12 : vector<1x8x32xf32> to vector<8x32xf32>
      %cst = arith.constant 0.176776692 : f32
      %14 = vector.broadcast %cst : f32 to vector<8x32xf32>
      %15 = arith.mulf %13, %14 : vector<8x32xf32>
      %c0_7 = arith.constant 0 : index
      %c0_8 = arith.constant 0 : index
      %c0_9 = arith.constant 0 : index
      %16 = vector.load %arg4[%c0_7, %c0_8, %c0_9] : memref<1x8x32xf32, #tpu.memory_space<vmem>>, vector<1x8x32xf32>
      %17 = vector.shape_cast %16 : vector<1x8x32xf32> to vector<8x32xf32>
      %c0_10 = arith.constant 0 : index
      %c0_11 = arith.constant 0 : index
      %c0_12 = arith.constant 0 : index
      %18 = vector.load %arg5[%c0_10, %c0_11, %c0_12] : memref<1x8x32xf32, #tpu.memory_space<vmem>>, vector<1x8x32xf32>
      %19 = vector.shape_cast %18 : vector<1x8x32xf32> to vector<8x32xf32>
      %cst_13 = arith.constant dense<0.000000e+00> : vector<8x8xf32>
      %20 = tpu.matmul %15, %17, %cst_13 {dimension_numbers = #tpu.dot_dimension_numbers<[1], [1], [0], [0], [0, 0, 1, 0], [], []>} : vector<8x32xf32>, vector<8x32xf32>, vector<8x8xf32> -> vector<8x8xf32>
      %c8_i32_14 = arith.constant 8 : i32
      %21 = arith.muli %arg1, %c8_i32_14 : i32
      %22 = tpu.iota {dimensions = array<i32: 0>} : vector<8x8xi32>
      %23 = vector.broadcast %21 : i32 to vector<8x8xi32>
      %24 = arith.addi %23, %22 : vector<8x8xi32>
      %c8_i32_15 = arith.constant 8 : i32
      %25 = arith.muli %arg2, %c8_i32_15 : i32
      %26 = tpu.iota {dimensions = array<i32: 1>} : vector<8x8xi32>
      %27 = vector.broadcast %25 : i32 to vector<8x8xi32>
      %28 = arith.addi %27, %26 : vector<8x8xi32>
      %29 = arith.cmpi sgt, %28, %24 : vector<8x8xi32>
      %cst_16 = arith.constant -1.000000e+30 : f32
      %30 = vector.broadcast %cst_16 : f32 to vector<8x8xf32>
      %31 = arith.select %29, %30, %20 : vector<8x8xi1>, vector<8x8xf32>
      %c0_17 = arith.constant 0 : index
      %c0_18 = arith.constant 0 : index
      %32 = vector.load %arg7[%c0_17, %c0_18] : memref<8x1xf32, #tpu.memory_space<vmem>>, vector<8x1xf32>
      %cst_19 = arith.constant dense<0xFF800000> : vector<8xf32>
      %33 = vector.multi_reduction <maximumf>, %31, %cst_19 [1] : vector<8x8xf32> to vector<8xf32>
      %34 = vector.shape_cast %33 : vector<8xf32> to vector<8x1xf32>
      %35 = arith.maximumf %32, %34 : vector<8x1xf32>
      %36 = arith.subf %32, %35 : vector<8x1xf32>
      %37 = math.exp %36 : vector<8x1xf32>
      %38 = vector.broadcast %35 : vector<8x1xf32> to vector<8x8xf32>
      %39 = arith.subf %31, %38 : vector<8x8xf32>
      %40 = math.exp %39 : vector<8x8xf32>
      %c0_20 = arith.constant 0 : index
      %c0_21 = arith.constant 0 : index
      %41 = vector.load %arg8[%c0_20, %c0_21] : memref<8x1xf32, #tpu.memory_space<vmem>>, vector<8x1xf32>
      %42 = arith.mulf %37, %41 : vector<8x1xf32>
      %cst_22 = arith.constant dense<0.000000e+00> : vector<8xf32>
      %43 = vector.multi_reduction <add>, %40, %cst_22 [1] : vector<8x8xf32> to vector<8xf32>
      %44 = vector.shape_cast %43 : vector<8xf32> to vector<8x1xf32>
      %45 = arith.addf %42, %44 : vector<8x1xf32>
      %c0_23 = arith.constant 0 : index
      %c0_24 = arith.constant 0 : index
      %46 = vector.load %arg8[%c0_23, %c0_24] : memref<8x1xf32, #tpu.memory_space<vmem>>, vector<8x1xf32>
      tpu.vector_store %arg8[%c0_23, %c0_24], %45 {strides = array<i32>} : memref<8x1xf32, #tpu.memory_space<vmem>>, vector<8x1xf32>,
      %c0_25 = arith.constant 0 : index
      %c0_26 = arith.constant 0 : index
      %47 = vector.load %arg9[%c0_25, %c0_26] : memref<8x32xf32, #tpu.memory_space<vmem>>, vector<8x32xf32>
      %48 = vector.broadcast %37 : vector<8x1xf32> to vector<8x32xf32>
      %49 = arith.mulf %48, %47 : vector<8x32xf32>
      %cst_27 = arith.constant dense<0.000000e+00> : vector<8x32xf32>
      %50 = tpu.matmul %40, %19, %cst_27 {dimension_numbers = #tpu.dot_dimension_numbers<[1], [0], [0], [1], [0, 0, 1, 1], [], []>} : vector<8x8xf32>, vector<8x32xf32>, vector<8x32xf32> -> vector<8x32xf32>
      %51 = arith.addf %49, %50 : vector<8x32xf32>
      %c0_28 = arith.constant 0 : index
      %c0_29 = arith.constant 0 : index
      %52 = vector.load %arg9[%c0_28, %c0_29] : memref<8x32xf32, #tpu.memory_space<vmem>>, vector<8x32xf32>
      tpu.vector_store %arg9[%c0_28, %c0_29], %51 {strides = array<i32>} : memref<8x32xf32, #tpu.memory_space<vmem>>, vector<8x32xf32>,
      %c0_30 = arith.constant 0 : index
      %c0_31 = arith.constant 0 : index
      %53 = vector.load %arg7[%c0_30, %c0_31] : memref<8x1xf32, #tpu.memory_space<vmem>>, vector<8x1xf32>
      tpu.vector_store %arg7[%c0_30, %c0_31], %35 {strides = array<i32>} : memref<8x1xf32, #tpu.memory_space<vmem>>, vector<8x1xf32>,
    } else {
    }
    %c0_i32_3 = arith.constant 0 : i32
    %9 = arith.cmpi eq, %arg2, %c0_i32_3 : i32
    %10 = arith.extui %9 : i1 to i32
    %c0_i32_4 = arith.constant 0 : i32
    %11 = arith.cmpi ne, %10, %c0_i32_4 : i32
    scf.if %11 {
      %c0 = arith.constant 0 : index
      %c0_5 = arith.constant 0 : index
      %12 = vector.load %arg9[%c0, %c0_5] : memref<8x32xf32, #tpu.memory_space<vmem>>, vector<8x32xf32>
      %c0_6 = arith.constant 0 : index
      %c0_7 = arith.constant 0 : index
      %13 = vector.load %arg8[%c0_6, %c0_7] : memref<8x1xf32, #tpu.memory_space<vmem>>, vector<8x1xf32>
      %14 = vector.broadcast %13 : vector<8x1xf32> to vector<8x32xf32>
      %15 = arith.divf %12, %14 : vector<8x32xf32>
      %c0_8 = arith.constant 0 : index
      %c0_9 = arith.constant 0 : index
      %c0_10 = arith.constant 0 : index
      %16 = vector.load %arg6[%c0_8, %c0_9, %c0_10] : memref<1x8x32xf32, #tpu.memory_space<vmem>>, vector<1x8x32xf32>
      %17 = vector.shape_cast %16 : vector<1x8x32xf32> to vector<8x32xf32>
      %18 = vector.shape_cast %15 : vector<8x32xf32> to vector<1x8x32xf32>
      tpu.vector_store %arg6[%c0_8, %c0_9, %c0_10], %18 {strides = array<i32>} : memref<1x8x32xf32, #tpu.memory_space<vmem>>, vector<1x8x32xf32>,
    } else {
    }
    return
  }
  func.func @transform_0(%arg0: i32, %arg1: i32, %arg2: i32) -> (i32, i32, i32) {
    %c0_i32 = arith.constant 0 : i32
    %c0_i32_0 = arith.constant 0 : i32
    return %arg0, %arg1, %c0_i32 : i32, i32, i32
  }
  func.func @transform_1(%arg0: i32, %arg1: i32, %arg2: i32) -> (i32, i32, i32) {
    %c0_i32 = arith.constant 0 : i32
    %c0_i32_0 = arith.constant 0 : i32
    return %arg0, %arg2, %c0_i32 : i32, i32, i32
  }
  func.func @transform_2(%arg0: i32, %arg1: i32, %arg2: i32) -> (i32, i32, i32) {
    %c0_i32 = arith.constant 0 : i32
    %c0_i32_0 = arith.constant 0 : i32
    return %arg0, %arg2, %c0_i32 : i32, i32, i32
  }
  func.func @transform_3(%arg0: i32, %arg1: i32, %arg2: i32) -> (i32, i32, i32) {
    %c0_i32 = arith.constant 0 : i32
    %c0_i32_0 = arith.constant 0 : i32
    return %arg0, %arg1, %c0_i32 : i32, i32, i32
  }
}

</mosaic_0001>

<llo_original>
// kernel: tpu_custom_call.1
$region0: #{tpu_custom_call.1}
  #allocation0 [shape = 'u32[]', space=smem, size = 0x4, offset = 0x4, fixed_abs, tag = 'smem constant byte address 0x4 - core index']
  #allocation1 [shape = 'u32[72,128]{1,0:T(1,128)}', space=vmem, size = 0x9000, scoped, tag = 'internal scratch']
  #allocation2 [shape = 'f32[8,1]{1,0:T(8,128)}', space=vmem, size = 0x1000, scoped, tag = 'scratch operand']
  #allocation3 [shape = 'f32[8,1]{1,0:T(8,128)}', space=vmem, size = 0x1000, scoped, tag = 'scratch operand']
  #allocation4 [shape = 'f32[8,32]{1,0:T(8,128)}', space=vmem, size = 0x1000, scoped, tag = 'scratch operand']
  %s0 = inlined_call_operand.hbm [shape: f32[8,8,32], index: 0, kind: input, shape index: {}]
  %s1 = inlined_call_operand.hbm [shape: f32[8,8,32], index: 1, kind: input, shape index: {}]
  %s2 = inlined_call_operand.hbm [shape: f32[8,8,32], index: 2, kind: input, shape index: {}]
  %s3 = inlined_call_operand.hbm [shape: f32[8,8,32], index: 3, kind: output, shape index: {}]
  %s4 = sld [smem:[#allocation0]]
  $region69: #{tpu_custom_call.1} parent=0
    _
  %s6 = ssub.s32 1, %s4
  %s7 = scalar_select 0, %s6, %s4
  $region1: #{tpu_custom_call.1} parent=0
    #allocation5 [shape = 'u8[8192]{0}', space=vmem, size = 0x2000, scoped, tag = 'input window, operand 0']
    #allocation6 [shape = 's32[2]{0}', space=sflag, size = 0x8, scoped, tag = 'scoped memory for tpu_custom_call.1']
    #allocation7 [shape = 's32[2]{0}', space=sflag, size = 0x8, scoped, tag = 'scoped memory for tpu_custom_call.1']
    #allocation8 [shape = 'u8[8192]{0}', space=vmem, size = 0x2000, scoped, tag = 'input window, operand 1']
    #allocation9 [shape = 's32[2]{0}', space=sflag, size = 0x8, scoped, tag = 'scoped memory for tpu_custom_call.1']
    #allocation10 [shape = 'u8[8192]{0}', space=vmem, size = 0x2000, scoped, tag = 'input window, operand 2']
    #allocation11 [shape = 'u8[8192]{0}', space=vmem, size = 0x2000, scoped, tag = 'output window, operand 0']
    %8 = vsyncpa [#allocation6], 0
    %s9 = scalar_lea.sflag [#allocation6], 1
    %10 = vsyncpa %s9, 0
    %11 = vsyncpa [#allocation9], 0
    %s12 = scalar_lea.sflag [#allocation9], 1
    %13 = vsyncpa %s12, 0
    %14 = vsyncpa [#allocation7], 0
    %s15 = scalar_lea.sflag [#allocation7], 1
    %16 = vsyncpa %s15, 0
    loop: start=0, step=1, limit=10
    $region2: #{tpu_custom_call.1} parent=1 // loop_pre_header
      _
    $region3: #{tpu_custom_call.1} parent=1 // loop_header
      %s18 = sphi 0, %s22
      %p19 = scmp.ge.s32.totalorder %s18, 10
      %s25 = sphi 0, %s44
      %s26 = sphi 0, %s40
      %s27 = sphi 0, %s36
      %s28 = sphi 0, %s25
      %s29 = sphi 0, %s26
      %s30 = sphi 0, %s27
      %s31 = sphi 0, %s28
      %s32 = sphi 0, %s29
      %s33 = sphi 0, %s30
      %s49 = sphi 0, %s51
      %s52 = sphi 0, %s49
      %s53 = sphi 0, %s52
      %s69 = sphi 0, %s53
      %s77 = sphi 0, %s79
      %s80 = sphi 0, %s77
      %s81 = sphi 0, %s80
      %s97 = sphi 0, %s81
      %s105 = sphi 0, %s107
      %s108 = sphi 0, %s105
      %s109 = sphi 0, %s108
      %s125 = sphi 0, %s109
      %s133 = sphi 0, %s135
      %s136 = sphi 0, %s133
      %s137 = sphi 0, %s136
      %s153 = sphi 0, %s137
    $region4: #{tpu_custom_call.1} parent=1 // loop_header_branch
      %21 = sbr.rel (%p19) target = $region8
    $region5: #{tpu_custom_call.1} parent=1 // loop_body
      %s23 = ssub.s32 %s18, 1
      %s24 = ssub.s32 %s18, 2
      %s34 = sadd.s32 1, %s27
      %p35 = scmp.ge.s32.totalorder %s34, 1
      %s36 = scalar_select %p35, 0, %s34
      %s37 = sadd.s32 1, %s26
      %s38 = scalar_select %p35, %s37, %s26
      %p39 = scmp.ge.s32.totalorder %s38, 1
      %s40 = scalar_select %p39, 0, %s38
      %s41 = sadd.s32 1, %s25
      %s42 = scalar_select %p39, %s41, %s25
      %p43 = scmp.ge.s32.totalorder %s42, 8
      %s44 = scalar_select %p43, 0, %s42
      %s45 = ssub.s32 %s25, %s44
      %s46 = ssub.s32 %s26, %s40
      %s47 = sor.u32 %s45, %s46
      %p48 = scmp.eq.s32.totalorder %s47, 0
      %s50 = sadd.s32 %s49, 1
      %s51 = scalar_select %p48, %s49, %s50
      %p54 = pneg %p48
      %p55 = scmp.eq.s32.totalorder %s18, 7
      %p56 = por %p54, %p55
      %p57 = scmp.ne.s32.totalorder %s49, %s52
      %p58 = scmp.eq.s32.totalorder %s18, 0
      %p59 = por %p57, %p58
      %p60 = scmp.ne.s32.totalorder %s49, %s52
      %p61 = scmp.eq.s32.totalorder %s23, 7
      %p62 = por %p60, %p61
      %p63 = scmp.ne.s32.totalorder %s52, %s53
      %p64 = scmp.eq.s32.totalorder %s23, 0
      %p65 = por %p63, %p64
      %p66 = scmp.ne.s32.totalorder %s52, %s53
      %p67 = scmp.eq.s32.totalorder %s24, 7
      %p68 = por %p66, %p67
      %p70 = scmp.ne.s32.totalorder %s53, %s69
      %p71 = scmp.eq.s32.totalorder %s24, 0
      %p72 = por %p70, %p71
      %s73 = ssub.s32 %s25, %s44
      %s74 = ssub.s32 %s27, %s36
      %s75 = sor.u32 %s73, %s74
      %p76 = scmp.eq.s32.totalorder %s75, 0
      %s78 = sadd.s32 %s77, 1
      %s79 = scalar_select %p76, %s77, %s78
      %p82 = pneg %p76
      %p83 = scmp.eq.s32.totalorder %s18, 7
      %p84 = por %p82, %p83
      %p85 = scmp.ne.s32.totalorder %s77, %s80
      %p86 = scmp.eq.s32.totalorder %s18, 0
      %p87 = por %p85, %p86
      %p88 = scmp.ne.s32.totalorder %s77, %s80
      %p89 = scmp.eq.s32.totalorder %s23, 7
      %p90 = por %p88, %p89
      %p91 = scmp.ne.s32.totalorder %s80, %s81
      %p92 = scmp.eq.s32.totalorder %s23, 0
      %p93 = por %p91, %p92
      %p94 = scmp.ne.s32.totalorder %s80, %s81
      %p95 = scmp.eq.s32.totalorder %s24, 7
      %p96 = por %p94, %p95
      %p98 = scmp.ne.s32.totalorder %s81, %s97
      %p99 = scmp.eq.s32.totalorder %s24, 0
      %p100 = por %p98, %p99
      %s101 = ssub.s32 %s25, %s44
      %s102 = ssub.s32 %s27, %s36
      %s103 = sor.u32 %s101, %s102
      %p104 = scmp.eq.s32.totalorder %s103, 0
      %s106 = sadd.s32 %s105, 1
      %s107 = scalar_select %p104, %s105, %s106
      %p110 = pneg %p104
      %p111 = scmp.eq.s32.totalorder %s18, 7
      %p112 = por %p110, %p111
      %p113 = scmp.ne.s32.totalorder %s105, %s108
      %p114 = scmp.eq.s32.totalorder %s18, 0
      %p115 = por %p113, %p114
      %p116 = scmp.ne.s32.totalorder %s105, %s108
      %p117 = scmp.eq.s32.totalorder %s23, 7
      %p118 = por %p116, %p117
      %p119 = scmp.ne.s32.totalorder %s108, %s109
      %p120 = scmp.eq.s32.totalorder %s23, 0
      %p121 = por %p119, %p120
      %p122 = scmp.ne.s32.totalorder %s108, %s109
      %p123 = scmp.eq.s32.totalorder %s24, 7
      %p124 = por %p122, %p123
      %p126 = scmp.ne.s32.totalorder %s109, %s125
      %p127 = scmp.eq.s32.totalorder %s24, 0
      %p128 = por %p126, %p127
      %s129 = ssub.s32 %s25, %s44
      %s130 = ssub.s32 %s26, %s40
      %s131 = sor.u32 %s129, %s130
      %p132 = scmp.eq.s32.totalorder %s131, 0
      %s134 = sadd.s32 %s133, 1
      %s135 = scalar_select %p132, %s133, %s134
      %p138 = pneg %p132
      %p139 = scmp.eq.s32.totalorder %s18, 7
      %p140 = por %p138, %p139
      %p141 = scmp.ne.s32.totalorder %s133, %s136
      %p142 = scmp.eq.s32.totalorder %s18, 0
      %p143 = por %p141, %p142
      %p144 = scmp.ne.s32.totalorder %s133, %s136
      %p145 = scmp.eq.s32.totalorder %s23, 7
      %p146 = por %p144, %p145
      %p147 = scmp.ne.s32.totalorder %s136, %s137
      %p148 = scmp.eq.s32.totalorder %s23, 0
      %p149 = por %p147, %p148
      %p150 = scmp.ne.s32.totalorder %s136, %s137
      %p151 = scmp.eq.s32.totalorder %s24, 7
      %p152 = por %p150, %p151
      %p154 = scmp.ne.s32.totalorder %s137, %s153
      %p155 = scmp.eq.s32.totalorder %s24, 0
      %p156 = por %p154, %p155
      %p157 = scmp.le.s32.totalorder 1, %s18
      %p158 = scmp.lt.s32.totalorder %s18, 9
      %p159 = pnand %p157, %p158
      %p160 = pneg %p159
      // Predicated region
      $region9: #{tpu_custom_call.1} parent=5 // pred_check
        _
      $region10: #{tpu_custom_call.1} parent=5 // pred_check_branch
        %162 = sbr.rel (%p159) target = $region12
      $region11: #{tpu_custom_call.1} parent=5 // pred_region
        %s163 = ssub.s32 %s18, 1
      $region12: #{tpu_custom_call.1} parent=5 // pred_fallthru
        _
      %p164 = scmp.lt.s32.totalorder %s18, 8
      // Predicated region
      $region13: #{tpu_custom_call.1} parent=5 // pred_check
        %p165 = pneg %p164
      $region14: #{tpu_custom_call.1} parent=5 // pred_check_branch
        %167 = sbr.rel (%p165) target = $region16
      $region15: #{tpu_custom_call.1} parent=5 // pred_region
        // Predicated region
        $region17: #{tpu_custom_call.1} parent=15 // pred_check
          %p168 = pneg %p59
        $region18: #{tpu_custom_call.1} parent=15 // pred_check_branch
          %170 = sbr.rel (%p168) target = $region20
        $region19: #{tpu_custom_call.1} parent=15 // pred_region
          %s171 = sand.u32 %s49, 1
          %s172 = scalar_lea.sflag [#allocation6], %s171
          %s173 = sand.u32 %s49, 1
          %s174 = smul.addr %s173, 8
          %s175 = scalar_lea.vmem [#allocation5], %s174
          %177 = vsyncadd %s172, 0
          %s178 = sadd.s32 %s26, %s25
          %s179 = smul.addr %s178, 8
          %s180 = scalar_lea.hbm %s0, %s179
          %s182 = sshll.u32 %s180, 4
          %s183 = int_to_ptr.hbm [resolvable:$true] %s182
          %s184 = sshll.u32 %s175, 4
          %s185 = int_to_ptr.vmem [resolvable:$true] %s184
          %187 = dma.hbm_to_vmem [thread:$0]  %s183, 128, %s185, %s172
        $region20: #{tpu_custom_call.1} parent=15 // pred_fallthru
          _
        // Predicated region
        $region21: #{tpu_custom_call.1} parent=15 // pred_check
          %p188 = pneg %p87
        $region22: #{tpu_custom_call.1} parent=15 // pred_check_branch
          %190 = sbr.rel (%p188) target = $region24
        $region23: #{tpu_custom_call.1} parent=15 // pred_region
          %s191 = sand.u32 %s18, 1
          %s192 = scalar_lea.sflag [#allocation9], %s191
          %s193 = sand.u32 %s77, 1
          %s194 = smul.addr %s193, 8
          %s195 = scalar_lea.vmem [#allocation8], %s194
          %197 = vsyncadd %s192, 0
          %s198 = sadd.s32 %s27, %s25
          %s199 = smul.addr %s198, 8
          %s200 = scalar_lea.hbm %s1, %s199
          %s202 = sshll.u32 %s200, 4
          %s203 = int_to_ptr.hbm [resolvable:$true] %s202
          %s204 = sshll.u32 %s195, 4
          %s205 = int_to_ptr.vmem [resolvable:$true] %s204
          %207 = dma.hbm_to_vmem [thread:$0]  %s203, 128, %s205, %s192
        $region24: #{tpu_custom_call.1} parent=15 // pred_fallthru
          _
        // Predicated region
        $region25: #{tpu_custom_call.1} parent=15 // pred_check
          %p208 = pneg %p115
        $region26: #{tpu_custom_call.1} parent=15 // pred_check_branch
          %210 = sbr.rel (%p208) target = $region28
        $region27: #{tpu_custom_call.1} parent=15 // pred_region
          %s211 = sand.u32 %s18, 1
          %s212 = scalar_lea.sflag [#allocation9], %s211
          %s213 = sand.u32 %s105, 1
          %s214 = smul.addr %s213, 8
          %s215 = scalar_lea.vmem [#allocation10], %s214
          %217 = vsyncadd %s212, 0
          %s218 = sadd.s32 %s27, %s25
          %s219 = smul.addr %s218, 8
          %s220 = scalar_lea.hbm %s2, %s219
          %s222 = sshll.u32 %s220, 4
          %s223 = int_to_ptr.hbm [resolvable:$true] %s222
          %s224 = sshll.u32 %s215, 4
          %s225 = int_to_ptr.vmem [resolvable:$true] %s224
          %227 = dma.hbm_to_vmem [thread:$0]  %s223, 128, %s225, %s212
        $region28: #{tpu_custom_call.1} parent=15 // pred_fallthru
          _
      $region16: #{tpu_custom_call.1} parent=5 // pred_fallthru
        _
      %p228 = scmp.le.s32.totalorder 1, %s18
      %p229 = scmp.lt.s32.totalorder %s18, 9
      %p230 = pnand %p228, %p229
      %p231 = pneg %p230
      // Predicated region
      $region29: #{tpu_custom_call.1} parent=5 // pred_check
        _
      $region30: #{tpu_custom_call.1} parent=5 // pred_check_branch
        %233 = sbr.rel (%p230) target = $region32
      $region31: #{tpu_custom_call.1} parent=5 // pred_region
        %s234 = ssub.s32 %s18, 1
        %s235 = sand.u32 %s52, 1
        %s236 = scalar_lea.sflag [#allocation6], %s235
        %s237 = sand.u32 %s52, 1
        %s238 = smul.addr %s237, 8
        %s239 = scalar_lea.vmem [#allocation5], %s238
        // Predicated region
        $region33: #{tpu_custom_call.1} parent=31 // pred_check
          %p240 = pneg %p65
        $region34: #{tpu_custom_call.1} parent=31 // pred_check_branch
          %242 = sbr.rel (%p240) target = $region36
        $region35: #{tpu_custom_call.1} parent=31 // pred_region
          %244 = dma.done %s236, 128
        $region36: #{tpu_custom_call.1} parent=31 // pred_fallthru
          _
        %s245 = sand.u32 %s23, 1
        %s246 = scalar_lea.sflag [#allocation9], %s245
        %s247 = sand.u32 %s80, 1
        %s248 = smul.addr %s247, 8
        %s249 = scalar_lea.vmem [#allocation8], %s248
        // Predicated region
        $region37: #{tpu_custom_call.1} parent=31 // pred_check
          %p250 = pneg %p93
        $region38: #{tpu_custom_call.1} parent=31 // pred_check_branch
          %252 = sbr.rel (%p250) target = $region40
        $region39: #{tpu_custom_call.1} parent=31 // pred_region
          %254 = dma.done %s246, 128
        $region40: #{tpu_custom_call.1} parent=31 // pred_fallthru
          _
        %s255 = sand.u32 %s23, 1
        %s256 = scalar_lea.sflag [#allocation9], %s255
        %s257 = sand.u32 %s108, 1
        %s258 = smul.addr %s257, 8
        %s259 = scalar_lea.vmem [#allocation10], %s258
        // Predicated region
        $region41: #{tpu_custom_call.1} parent=31 // pred_check
          %p260 = pneg %p121
        $region42: #{tpu_custom_call.1} parent=31 // pred_check_branch
          %262 = sbr.rel (%p260) target = $region44
        $region43: #{tpu_custom_call.1} parent=31 // pred_region
          %264 = dma.done %s256, 128
        $region44: #{tpu_custom_call.1} parent=31 // pred_fallthru
          _
        %s265 = sand.u32 %s52, 1
        %s266 = scalar_lea.sflag [#allocation6], %s265
        %s267 = sand.u32 %s52, 1
        %s268 = smul.addr %s267, 8
        %s269 = scalar_lea.vmem [#allocation5], %s268
        %p270 = pneg %p65
        %p271 = pneg %p62
        %s272 = sand.u32 %s23, 1
        %s273 = scalar_lea.sflag [#allocation9], %s272
        %s274 = sand.u32 %s80, 1
        %s275 = smul.addr %s274, 8
        %s276 = scalar_lea.vmem [#allocation8], %s275
        %p277 = pneg %p93
        %p278 = pneg %p90
        %s279 = sand.u32 %s23, 1
        %s280 = scalar_lea.sflag [#allocation9], %s279
        %s281 = sand.u32 %s108, 1
        %s282 = smul.addr %s281, 8
        %s283 = scalar_lea.vmem [#allocation10], %s282
        %p284 = pneg %p121
        %p285 = pneg %p118
        %p286 = pneg %p149
        %p287 = pneg %p146
        %s288 = sand.u32 %s136, 1
        %s289 = scalar_lea.sflag [#allocation7], %s288
        %s290 = sand.u32 %s136, 1
        %s291 = smul.addr %s290, 8
        %s292 = scalar_lea.vmem [#allocation11], %s291
        %p293 = scmp.eq.s32.totalorder %s30, 0
        // Predicated region
        $region45: #{tpu_custom_call.1} parent=31 // pred_check
          %p294 = pneg %p293
        $region46: #{tpu_custom_call.1} parent=31 // pred_check_branch
          %296 = sbr.rel (%p294) target = $region48
        $region47: #{tpu_custom_call.1} parent=31 // pred_region
          %vm297 = vcmask 7168
          %298 = vst.msk [vmem:[#allocation2] sm:$0xff] %vm297, -1e+30
          %299 = vst.msk [vmem:[#allocation3] sm:$0xff] %vm297, 0.0
          %vm300 = vcmask 261120
          %301 = vst.msk [vmem:[#allocation4] sm:$0xff] %vm300, 0.0
        $region48: #{tpu_custom_call.1} parent=31 // pred_fallthru
          _
        %s302 = smul.u32 %s30, 8
        %s303 = sadd.s32 %s29, 1
        %s304 = smul.u32 %s303, 8
        %p305 = scmp.lt.s32.totalorder %s302, %s304
        // Predicated region
        $region49: #{tpu_custom_call.1} parent=31 // pred_check
          %p306 = pneg %p305
        $region50: #{tpu_custom_call.1} parent=31 // pred_check_branch
          %308 = sbr.rel (%p306) target = $region52
        $region51: #{tpu_custom_call.1} parent=31 // pred_region
          %v309 = vld [vmem:[%s239] sm:$0xff]
          %v310 = vmul.f32 %v309, 0.17677669
          %v311 = vld [vmem:[%s249] sm:$0xff]
          %v312 = vld [vmem:[%s259] sm:$0xff]
          %vm313 = vcmask 261120
          %v315 = vsel %vm313, %v310, 0
          %v318 = vsel %vm313, %v311, 0
          %320 = vmatpush.xpose.msra.mxu0 0.0
          %321 = vmatpush.xpose.msra.mxu0 0.0
          %322 = vmatpush.xpose.msra.mxu0 0.0
          %323 = vmatpush.xpose.msra.mxu0 0.0
          %324 = vmatpush.xpose.msra.mxu0 0.0
          %325 = vmatpush.xpose.msra.mxu0 0.0
          %326 = vmatpush.xpose.msra.mxu0 0.0
          %327 = vmatpush.xpose.msra.mxu0 0.0
          %328 = vmatpush.xpose.msra.mxu0 0.0
          %329 = vmatpush.xpose.msra.mxu0 0.0
          %330 = vmatpush.xpose.msra.mxu0 0.0
          %331 = vmatpush.xpose.msra.mxu0 0.0
          %332 = vmatpush.xpose.msra.mxu0 0.0
          %333 = vmatpush.xpose.msra.mxu0 0.0
          %334 = vmatpush.xpose.msra.mxu0 0.0
          %335 = vmatpush.xpose.msra.mxu0 %v318
          %336 = vmatmul.f32.gmra.mxu0 %v315
          %v337 = vpop.f32.mrf.mxu0
          %v338 = vadd.f32 0.0, %v337
          %339 = vdwg.mxu0
          %s340 = smul.u32 %s29, 8
          %v341 = vlaneseq
          %v342 = vshrl.u32 %v341, 7
          %v343 = vstv %s340
          %v344 = vadd.s32 %v343, %v342
          %v345 = vlaneseq
          %v346 = vand.u32 %v345, 127
          %v347 = vstv %s302
          %v348 = vadd.s32 %v347, %v346
          %vm349 = vcmp.gt.s32.totalorder %v348, %v344
          %v350 = vsel %vm349, -1e+30, %v338
          %v351 = vld [vmem:[#allocation2] sm:$0xff]
          %vm352 = vcmask 64512
          %v353 = vsel %vm352, %v350, -inf
          %354 = vmax.xlane.f32.xlu0 %v353
          %v355 = vpop.xlane.xlu0 %354
          %v356 = vmax.f32 %v351, %v355
          %v357 = vsub.f32 %v351, %v356
          %v358 = vmul.f32 %v357, 1.442695
          %v359 = vpow.pop %v358
          %361 = vset.pattern.permute.xlu0 0
          %362 = vperm.xlu0 %361, %v356
          %v363 = vpop.permute.xlu0 %362
          %v365 = vsub.f32 %v350, %v363
          %v366 = vmul.f32 %v365, 1.442695
          %v367 = vpow.pop %v366
          %v368 = vld [vmem:[#allocation3] sm:$0xff]
          %v369 = vmul.f32 %v359, %v368
          %v370 = vsel %vm352, %v367, 0.0
          %371 = vadd.xlane.f32.xlu0 %v370
          %v372 = vpop.xlane.xlu0 %371
          %v373 = vadd.f32 %v369, %v372
          %vm374 = vcmask 7168
          %375 = vst.msk [vmem:[#allocation3] sm:$0xff] %vm374, %v373
          %v376 = vld [vmem:[#allocation4] sm:$0xff]
          %378 = vset.pattern.permute.xlu0 0
          %379 = vperm.xlu0 %378, %v359
          %v380 = vpop.permute.xlu0 %379
          %v382 = vmul.f32 %v380, %v376
          %v384 = vsel %vm352, %v367, 0
          %386 = vmatpush.msra.mxu0 0.0
          %387 = vmatpush.msra.mxu0 0.0
          %388 = vmatpush.msra.mxu0 0.0
          %389 = vmatpush.msra.mxu0 0.0
          %390 = vmatpush.msra.mxu0 0.0
          %391 = vmatpush.msra.mxu0 0.0
          %392 = vmatpush.msra.mxu0 0.0
          %393 = vmatpush.msra.mxu0 0.0
          %394 = vmatpush.msra.mxu0 0.0
          %395 = vmatpush.msra.mxu0 0.0
          %396 = vmatpush.msra.mxu0 0.0
          %397 = vmatpush.msra.mxu0 0.0
          %398 = vmatpush.msra.mxu0 0.0
          %399 = vmatpush.msra.mxu0 0.0
          %400 = vmatpush.msra.mxu0 0.0
          %401 = vmatpush.msra.mxu0 %v312
          %402 = vmatmul.f32.gmra.mxu0 %v384
          %v403 = vpop.f32.mrf.mxu0
          %v404 = vadd.f32 0.0, %v403
          %405 = vdwg.mxu0
          %v406 = vadd.f32 %v382, %v404
          %407 = vst.msk [vmem:[#allocation4] sm:$0xff] %vm313, %v406
          %408 = vst.msk [vmem:[#allocation2] sm:$0xff] %vm374, %v356
        $region52: #{tpu_custom_call.1} parent=31 // pred_fallthru
          _
        // Predicated region
        $region53: #{tpu_custom_call.1} parent=31 // pred_check
          %p409 = pneg %p293
        $region54: #{tpu_custom_call.1} parent=31 // pred_check_branch
          %411 = sbr.rel (%p409) target = $region56
        $region55: #{tpu_custom_call.1} parent=31 // pred_region
          %v412 = vld [vmem:[#allocation4] sm:$0xff]
          %v413 = vld [vmem:[#allocation3] sm:$0xff]
          %415 = vset.pattern.permute.xlu0 0
          %416 = vperm.xlu0 %415, %v413
          %v417 = vpop.permute.xlu0 %416
          %v419 = vrcp.pop %v417
          %v420 = vmul.f32 %v417, %v419
          %v421 = vsub.f32 1.0, %v420
          %v422 = vmul.f32 %v419, %v421
          %v423 = vadd.f32 %v419, %v422
          %vm424 = vweird.f32 %v417
          %vm425 = vweird.f32 %v419
          %vm426 = vmor %vm424, %vm425
          %v427 = vsel %vm426, %v419, %v423
          %v428 = vand.u32 2147483647, %v417
          %vm429 = vcmp.eq.f32.partialorder %v428, 8.507059e+37
          %v430 = vand.u32 %v417, 2147483648
          %v431 = vor.u32 1.1754944e-38, %v430
          %v432 = vsel %vm429, %v431, %v427
          %v433 = vmul.f32 %v412, %v432
          %vm434 = vcmask 261120
          %435 = vst.msk [vmem:[%s292] sm:$0xff] %vm434, %v433
        $region56: #{tpu_custom_call.1} parent=31 // pred_fallthru
          _
        %s436 = sand.u32 %s136, 1
        %s437 = scalar_lea.sflag [#allocation7], %s436
        %s438 = sand.u32 %s136, 1
        %s439 = smul.addr %s438, 8
        %s440 = scalar_lea.vmem [#allocation11], %s439
        // Predicated region
        $region57: #{tpu_custom_call.1} parent=31 // pred_check
          %p441 = pneg %p146
        $region58: #{tpu_custom_call.1} parent=31 // pred_check_branch
          %443 = sbr.rel (%p441) target = $region60
        $region59: #{tpu_custom_call.1} parent=31 // pred_region
          %445 = vsyncadd %s437, 0
          %s446 = sadd.s32 %s29, %s28
          %s447 = smul.addr %s446, 8
          %s448 = scalar_lea.hbm %s3, %s447
          %s450 = sshll.u32 %s440, 4
          %s451 = int_to_ptr.vmem [resolvable:$true] %s450
          %s452 = sshll.u32 %s448, 4
          %s453 = int_to_ptr.hbm [resolvable:$true] %s452
          %455 = dma.vmem_to_hbm [thread:$0]  %s451, 128, %s453, %s437
        $region60: #{tpu_custom_call.1} parent=31 // pred_fallthru
          _
      $region32: #{tpu_custom_call.1} parent=5 // pred_fallthru
        _
      %p456 = scmp.le.s32.totalorder 2, %s18
      // Predicated region
      $region61: #{tpu_custom_call.1} parent=5 // pred_check
        %p457 = pneg %p456
      $region62: #{tpu_custom_call.1} parent=5 // pred_check_branch
        %459 = sbr.rel (%p457) target = $region64
      $region63: #{tpu_custom_call.1} parent=5 // pred_region
        %s460 = ssub.s32 %s18, 2
        // Predicated region
        $region65: #{tpu_custom_call.1} parent=63 // pred_check
          %p461 = pneg %p152
        $region66: #{tpu_custom_call.1} parent=63 // pred_check_branch
          %463 = sbr.rel (%p461) target = $region68
        $region67: #{tpu_custom_call.1} parent=63 // pred_region
          %s464 = sand.u32 %s137, 1
          %s465 = scalar_lea.sflag [#allocation7], %s464
          %s466 = sand.u32 %s137, 1
          %s467 = smul.addr %s466, 8
          %s468 = scalar_lea.vmem [#allocation11], %s467
          %470 = dma.done %s465, 128
        $region68: #{tpu_custom_call.1} parent=63 // pred_fallthru
          _
      $region64: #{tpu_custom_call.1} parent=5 // pred_fallthru
        _
    $region6: #{tpu_custom_call.1} parent=1 // loop_footer
      %s22 = sadd.s32 1, %s18
    $region7: #{tpu_custom_call.1} parent=1 // loop_footer_branch
      %17 = sbr.rel target = $region3
    $region8: #{tpu_custom_call.1} parent=1 // loop_exit
      _
    %471 = vsyncpa [#allocation6], 1
    %s472 = scalar_lea.sflag [#allocation6], 1
    %473 = vsyncpa %s472, 1
    %474 = vsyncpa [#allocation9], 1
    %s475 = scalar_lea.sflag [#allocation9], 1
    %476 = vsyncpa %s475, 1
    %477 = vsyncpa [#allocation7], 1
    %s478 = scalar_lea.sflag [#allocation7], 1
    %479 = vsyncpa %s478, 1

</llo_original>
